<compile_context>
chip_gen: v7x
topology: tpu7x:2x2x1
jax: 0.10.0
libtpu: 0.0.40
codegen_flags: <defaults>
</compile_context>

<pallas_src>
import itertools
import numpy as np
import jax
import jax.numpy as jnp
from jax.experimental import pallas as pl
from jax.experimental.pallas import tpu as pltpu


GATES_PER_BLOCK = 4   # gates applied per grid step (amortizes per-step overhead)


# ----------------------------------------------------------------------
# Glue: deterministic construction of the RBS unitary decomposition
# (equivalent of RBS_Unitaries(2*I, 2, list_gates, device) in the repo).
# ----------------------------------------------------------------------
def rbs_unitaries(nbr_qubits, list_gates):
    """Hamming-weight-2 basis decomposition (M_cos, M_sin, M_id) per gate."""
    basis = list(itertools.combinations(range(nbr_qubits), 2))
    index = {s: i for i, s in enumerate(basis)}
    D = len(basis)
    out = {}
    for (a, b) in list_gates:
        a_, b_ = min(a, b), max(a, b)
        m_cos = np.zeros((D, D), dtype=np.float32)
        m_sin = np.zeros((D, D), dtype=np.float32)
        m_id = np.zeros((D, D), dtype=np.float32)
        for s in basis:
            i = index[s]
            has_a, has_b = (a_ in s), (b_ in s)
            if has_a == has_b:
                m_id[i, i] = 1.0            # untouched basis state
            elif has_a:
                k = s[0] if s[1] == a_ else s[1]
                j = index[tuple(sorted((b_, k)))]
                m_cos[i, i] = 1.0
                m_sin[i, j] = 1.0
            else:
                k = s[0] if s[1] == b_ else s[1]
                j = index[tuple(sorted((a_, k)))]
                m_cos[i, i] = 1.0
                m_sin[i, j] = -1.0
        out[(a, b)] = (m_cos, m_sin, m_id)
    return out


# ----------------------------------------------------------------------
# Pallas kernel: one grid step applies `gb` consecutive gates; the state
# lives in the resident output block.
# ----------------------------------------------------------------------
def _make_kernel(gb):
    def dense_rbs_kernel(cos_ref, sin_ref,        # scalar-prefetch (SMEM), (Gp,)
                         diag_ref,                # (gb, 2, Dp) f32: [d0; d2]
                         m1t_ref,                 # (gb, Dp, Dp) bf16: M1^T
                         state_ref,               # (Bp, Dp) f32 initial state
                         out_ref):                # (Bp, Dp) f32, resident acc
        step = pl.program_id(0)

        @pl.when(step == 0)
        def _():
            out_ref[...] = state_ref[...]

        base = step * gb
        state = out_ref[...]
        for k in range(gb):                        # chained -> inherently serial
            c = cos_ref[base + k]
            s = sin_ref[base + k]
            d0 = diag_ref[k, 0:1, :]               # (1, Dp) diag of M0
            d2 = diag_ref[k, 1:2, :]               # (1, Dp) diag of M2
            m1 = m1t_ref[k].astype(jnp.float32)    # (Dp, Dp), exact upcast
            p1 = jnp.dot(state, m1, preferred_element_type=jnp.float32)
            state = state * (d0 * c + d2) + p1 * s
        out_ref[...] = state

    return dense_rbs_kernel


def dense_rbs_state_vector(input_state, angles, d0, d2, m1t,
                           gates_per_block=GATES_PER_BLOCK):
    """input_state: (B, D) f32; angles: (G,);
       d0, d2: (G, D) diagonals of M0/M2; m1t: (G, D, D) = M1^T per gate."""
    B, D = input_state.shape
    G = int(angles.shape[0])
    gb = int(max(1, min(gates_per_block, G)))
    n_blocks = -(-G // gb)
    Gp = n_blocks * gb

    # Lane/sublane-dense padding: B -> mult of 8, D -> mult of 128.
    Bp = ((max(B, 8) + 7) // 8) * 8
    Dp = ((D + 127) // 128) * 128

    # Padded gates are identities: cos=1, sin=0, d0=0, d2=1, M1=0.
    cos_vals = jnp.ones((Gp,), jnp.float32).at[:G].set(
        jnp.cos(angles).astype(jnp.float32))
    sin_vals = jnp.zeros((Gp,), jnp.float32).at[:G].set(
        jnp.sin(angles).astype(jnp.float32))

    x_p = jnp.zeros((Bp, Dp), jnp.float32)
    x_p = x_p.at[:B, :D].set(input_state.astype(jnp.float32))

    diag = jnp.zeros((Gp, 2, Dp), jnp.float32)
    diag = diag.at[:G, 0, :D].set(d0.astype(jnp.float32))
    diag = diag.at[:G, 1, :D].set(d2.astype(jnp.float32))
    diag = diag.at[G:, 1, :].set(1.0)

    # 0/+-1 entries are exactly representable in bf16 -> lossless, 2x less HBM.
    m1p = jnp.zeros((Gp, Dp, Dp), jnp.bfloat16)
    m1p = m1p.at[:G, :D, :D].set(m1t.astype(jnp.bfloat16))

    out_p = pl.pallas_call(
        _make_kernel(gb),
        out_shape=jax.ShapeDtypeStruct((Bp, Dp), jnp.float32),
        grid_spec=pltpu.PrefetchScalarGridSpec(
            num_scalar_prefetch=2,
            grid=(n_blocks,),
            in_specs=[
                pl.BlockSpec((gb, 2, Dp), lambda i, c, s: (i, 0, 0)),   # diagonals
                pl.BlockSpec((gb, Dp, Dp), lambda i, c, s: (i, 0, 0)),  # M1^T block
                pl.BlockSpec((Bp, Dp), lambda i, c, s: (0, 0)),         # initial state
            ],
            out_specs=pl.BlockSpec((Bp, Dp), lambda i, c, s: (0, 0)),
        ),
        compiler_params=pltpu.CompilerParams(
            dimension_semantics=("arbitrary",)),
    )(cos_vals, sin_vals, diag, m1p, x_p)

    return out_p[:B, :D]


# ----------------------------------------------------------------------
# Pure-JAX reference (mirrors the PyTorch forward exactly, dense matrices).
# ----------------------------------------------------------------------
def reference(input_state, angles, m0, m1, m2):
    state = input_state
    for g in range(angles.shape[0]):
        U = (m0[g] * jnp.cos(angles[g])
             + m1[g] * jnp.sin(angles[g])
             + m2[g])
        # torch: matmul(U[None], state[..., None]).squeeze(-1)  ==  state @ U.T
        state = state @ U.T
    return state


if __name__ == "__main__":
    # Small, deterministic configuration consistent with the module:
    #   I = 4  ->  n = 2*I = 8 qubits  ->  D = binom(8, 2) = 28
    I = 4
    n_qubits = 2 * I
    D = n_qubits * (n_qubits - 1) // 2          # 28
    B = 2                                       # batch
    # A pyramid-ish list of nearest-neighbour RBS gates.
    list_gates = [(i, i + 1) for i in range(n_qubits - 1)] + \
                 [(i, i + 1) for i in range(0, n_qubits - 1, 2)]
    G = len(list_gates)

    key = jax.random.PRNGKey(0)
    k_ang, k_in = jax.random.split(key)
    # nn.Parameter(torch.rand(())) per gate  ->  uniform [0, 1) angles.
    angles = jax.random.uniform(k_ang, (G,), dtype=jnp.float32)
    # Input state vector in the HW-2 basis, normalized per batch element.
    x = jax.random.normal(k_in, (B, D), dtype=jnp.float32)
    x = x / jnp.linalg.norm(x, axis=-1, keepdims=True)

    # Build the RBS unitary decomposition and stack per gate (in gate order).
    unis = rbs_unitaries(n_qubits, list_gates)
    m0 = jnp.stack([jnp.asarray(unis[g][0]) for g in list_gates])   # (G, D, D)
    m1 = jnp.stack([jnp.asarray(unis[g][1]) for g in list_gates])
    m2 = jnp.stack([jnp.asarray(unis[g][2]) for g in list_gates])
    # M0 / M2 are diagonal by construction -> pass only their diagonals.
    d0 = jnp.diagonal(m0, axis1=1, axis2=2)                         # (G, D)
    d2 = jnp.diagonal(m2, axis1=1, axis2=2)                         # (G, D)
    m1t = jnp.transpose(m1, (0, 2, 1))                              # (G, D, D)

    out = dense_rbs_state_vector(x, angles, d0, d2, m1t)
    out = jax.block_until_ready(out)

    ref = reference(x, angles, m0, m1, m2)
    np.testing.assert_allclose(np.asarray(out), np.asarray(ref),
                               rtol=1e-5, atol=1e-5)
    print("KERNEL_OK")
</pallas_src>

<mosaic_0001>
module attributes {stable_mosaic.version = 11 : i64} {
  func.func @dense_rbs_kernel(%arg0: i32, %arg1: memref<12xf32, #tpu.memory_space<smem>>, %arg2: memref<12xf32, #tpu.memory_space<smem>>, %arg3: memref<4x2x128xf32, #tpu.memory_space<vmem>>, %arg4: memref<4x128x128xbf16, #tpu.memory_space<vmem>>, %arg5: memref<8x128xf32, #tpu.memory_space<vmem>>, %arg6: memref<8x128xf32, #tpu.memory_space<vmem>>) attributes {dimension_semantics = [#tpu.dimension_semantics<arbitrary>], iteration_bounds = array<i64: 3>, scalar_prefetch = 2 : i64, scratch_operands = 0 : i64, tpu.core_type = #tpu.core_type<tc>, window_params = [{transform_indices = @transform_0, window_bounds = array<i64: 4, 2, 128>}, {transform_indices = @transform_1, window_bounds = array<i64: 4, 128, 128>}, {pipeline_mode = #tpu.pipeline_mode<synchronous>, transform_indices = @transform_2, window_bounds = array<i64: 8, 128>}, {pipeline_mode = #tpu.pipeline_mode<synchronous>, transform_indices = @transform_3, window_bounds = array<i64: 8, 128>}]} {
    %c0_i32 = arith.constant 0 : i32
    %0 = arith.cmpi eq, %arg0, %c0_i32 : i32
    %1 = arith.extui %0 : i1 to i32
    %c0_i32_0 = arith.constant 0 : i32
    %2 = arith.cmpi ne, %1, %c0_i32_0 : i32
    scf.if %2 {
      %c0_45 = arith.constant 0 : index
      %c0_46 = arith.constant 0 : index
      %94 = vector.load %arg5[%c0_45, %c0_46] : memref<8x128xf32, #tpu.memory_space<vmem>>, vector<8x128xf32>
      %c0_47 = arith.constant 0 : index
      %c0_48 = arith.constant 0 : index
      %95 = vector.load %arg6[%c0_47, %c0_48] : memref<8x128xf32, #tpu.memory_space<vmem>>, vector<8x128xf32>
      tpu.vector_store %arg6[%c0_47, %c0_48], %94 {strides = array<i32>} : memref<8x128xf32, #tpu.memory_space<vmem>>, vector<8x128xf32>,
    } else {
    }
    %c4_i32 = arith.constant 4 : i32
    %3 = arith.muli %arg0, %c4_i32 : i32
    %c0 = arith.constant 0 : index
    %c0_1 = arith.constant 0 : index
    %4 = vector.load %arg6[%c0, %c0_1] : memref<8x128xf32, #tpu.memory_space<vmem>>, vector<8x128xf32>
    %c0_i32_2 = arith.constant 0 : i32
    %5 = arith.addi %3, %c0_i32_2 : i32
    %6 = arith.index_cast %5 : i32 to index
    %7 = memref.load %arg1[%6] : memref<12xf32, #tpu.memory_space<smem>>
    %c0_i32_3 = arith.constant 0 : i32
    %8 = arith.addi %3, %c0_i32_3 : i32
    %9 = arith.index_cast %8 : i32 to index
    %10 = memref.load %arg2[%9] : memref<12xf32, #tpu.memory_space<smem>>
    %c0_4 = arith.constant 0 : index
    %c0_5 = arith.constant 0 : index
    %c0_6 = arith.constant 0 : index
    %11 = vector.load %arg3[%c0_4, %c0_5, %c0_6] : memref<4x2x128xf32, #tpu.memory_space<vmem>>, vector<1x1x128xf32>
    %12 = vector.shape_cast %11 : vector<1x1x128xf32> to vector<1x128xf32>
    %c0_7 = arith.constant 0 : index
    %c1 = arith.constant 1 : index
    %c0_8 = arith.constant 0 : index
    %13 = vector.load %arg3[%c0_7, %c1, %c0_8] : memref<4x2x128xf32, #tpu.memory_space<vmem>>, vector<1x1x128xf32>
    %14 = vector.shape_cast %13 : vector<1x1x128xf32> to vector<1x128xf32>
    %c0_9 = arith.constant 0 : index
    %c0_10 = arith.constant 0 : index
    %c0_11 = arith.constant 0 : index
    %15 = vector.load %arg4[%c0_9, %c0_10, %c0_11] : memref<4x128x128xbf16, #tpu.memory_space<vmem>>, vector<1x128x128xbf16>
    %16 = vector.shape_cast %15 : vector<1x128x128xbf16> to vector<128x128xbf16>
    %17 = arith.extf %16 : vector<128x128xbf16> to vector<128x128xf32>
    %cst = arith.constant dense<0.000000e+00> : vector<8x128xf32>
    %18 = tpu.matmul %4, %17, %cst {dimension_numbers = #tpu.dot_dimension_numbers<[1], [0], [0], [1], [0, 0, 1, 1], [], []>} : vector<8x128xf32>, vector<128x128xf32>, vector<8x128xf32> -> vector<8x128xf32>
    %19 = vector.broadcast %7 : f32 to vector<1x128xf32>
    %20 = arith.mulf %12, %19 : vector<1x128xf32>
    %21 = arith.addf %20, %14 : vector<1x128xf32>
    %22 = vector.broadcast %21 : vector<1x128xf32> to vector<8x128xf32>
    %23 = arith.mulf %4, %22 : vector<8x128xf32>
    %24 = vector.broadcast %10 : f32 to vector<8x128xf32>
    %25 = arith.mulf %18, %24 : vector<8x128xf32>
    %26 = arith.addf %23, %25 : vector<8x128xf32>
    %c1_i32 = arith.constant 1 : i32
    %27 = arith.addi %3, %c1_i32 : i32
    %28 = arith.index_cast %27 : i32 to index
    %29 = memref.load %arg1[%28] : memref<12xf32, #tpu.memory_space<smem>>
    %c1_i32_12 = arith.constant 1 : i32
    %30 = arith.addi %3, %c1_i32_12 : i32
    %31 = arith.index_cast %30 : i32 to index
    %32 = memref.load %arg2[%31] : memref<12xf32, #tpu.memory_space<smem>>
    %c1_13 = arith.constant 1 : index
    %c0_14 = arith.constant 0 : index
    %c0_15 = arith.constant 0 : index
    %33 = vector.load %arg3[%c1_13, %c0_14, %c0_15] : memref<4x2x128xf32, #tpu.memory_space<vmem>>, vector<1x1x128xf32>
    %34 = vector.shape_cast %33 : vector<1x1x128xf32> to vector<1x128xf32>
    %c1_16 = arith.constant 1 : index
    %c1_17 = arith.constant 1 : index
    %c0_18 = arith.constant 0 : index
    %35 = vector.load %arg3[%c1_16, %c1_17, %c0_18] : memref<4x2x128xf32, #tpu.memory_space<vmem>>, vector<1x1x128xf32>
    %36 = vector.shape_cast %35 : vector<1x1x128xf32> to vector<1x128xf32>
    %c1_19 = arith.constant 1 : index
    %c0_20 = arith.constant 0 : index
    %c0_21 = arith.constant 0 : index
    %37 = vector.load %arg4[%c1_19, %c0_20, %c0_21] : memref<4x128x128xbf16, #tpu.memory_space<vmem>>, vector<1x128x128xbf16>
    %38 = vector.shape_cast %37 : vector<1x128x128xbf16> to vector<128x128xbf16>
    %39 = arith.extf %38 : vector<128x128xbf16> to vector<128x128xf32>
    %cst_22 = arith.constant dense<0.000000e+00> : vector<8x128xf32>
    %40 = tpu.matmul %26, %39, %cst_22 {dimension_numbers = #tpu.dot_dimension_numbers<[1], [0], [0], [1], [0, 0, 1, 1], [], []>} : vector<8x128xf32>, vector<128x128xf32>, vector<8x128xf32> -> vector<8x128xf32>
    %41 = vector.broadcast %29 : f32 to vector<1x128xf32>
    %42 = arith.mulf %34, %41 : vector<1x128xf32>
    %43 = arith.addf %42, %36 : vector<1x128xf32>
    %44 = vector.broadcast %43 : vector<1x128xf32> to vector<8x128xf32>
    %45 = arith.mulf %26, %44 : vector<8x128xf32>
    %46 = vector.broadcast %32 : f32 to vector<8x128xf32>
    %47 = arith.mulf %40, %46 : vector<8x128xf32>
    %48 = arith.addf %45, %47 : vector<8x128xf32>
    %c2_i32 = arith.constant 2 : i32
    %49 = arith.addi %3, %c2_i32 : i32
    %50 = arith.index_cast %49 : i32 to index
    %51 = memref.load %arg1[%50] : memref<12xf32, #tpu.memory_space<smem>>
    %c2_i32_23 = arith.constant 2 : i32
    %52 = arith.addi %3, %c2_i32_23 : i32
    %53 = arith.index_cast %52 : i32 to index
    %54 = memref.load %arg2[%53] : memref<12xf32, #tpu.memory_space<smem>>
    %c2 = arith.constant 2 : index
    %c0_24 = arith.constant 0 : index
    %c0_25 = arith.constant 0 : index
    %55 = vector.load %arg3[%c2, %c0_24, %c0_25] : memref<4x2x128xf32, #tpu.memory_space<vmem>>, vector<1x1x128xf32>
    %56 = vector.shape_cast %55 : vector<1x1x128xf32> to vector<1x128xf32>
    %c2_26 = arith.constant 2 : index
    %c1_27 = arith.constant 1 : index
    %c0_28 = arith.constant 0 : index
    %57 = vector.load %arg3[%c2_26, %c1_27, %c0_28] : memref<4x2x128xf32, #tpu.memory_space<vmem>>, vector<1x1x128xf32>
    %58 = vector.shape_cast %57 : vector<1x1x128xf32> to vector<1x128xf32>
    %c2_29 = arith.constant 2 : index
    %c0_30 = arith.constant 0 : index
    %c0_31 = arith.constant 0 : index
    %59 = vector.load %arg4[%c2_29, %c0_30, %c0_31] : memref<4x128x128xbf16, #tpu.memory_space<vmem>>, vector<1x128x128xbf16>
    %60 = vector.shape_cast %59 : vector<1x128x128xbf16> to vector<128x128xbf16>
    %61 = arith.extf %60 : vector<128x128xbf16> to vector<128x128xf32>
    %cst_32 = arith.constant dense<0.000000e+00> : vector<8x128xf32>
    %62 = tpu.matmul %48, %61, %cst_32 {dimension_numbers = #tpu.dot_dimension_numbers<[1], [0], [0], [1], [0, 0, 1, 1], [], []>} : vector<8x128xf32>, vector<128x128xf32>, vector<8x128xf32> -> vector<8x128xf32>
    %63 = vector.broadcast %51 : f32 to vector<1x128xf32>
    %64 = arith.mulf %56, %63 : vector<1x128xf32>
    %65 = arith.addf %64, %58 : vector<1x128xf32>
    %66 = vector.broadcast %65 : vector<1x128xf32> to vector<8x128xf32>
    %67 = arith.mulf %48, %66 : vector<8x128xf32>
    %68 = vector.broadcast %54 : f32 to vector<8x128xf32>
    %69 = arith.mulf %62, %68 : vector<8x128xf32>
    %70 = arith.addf %67, %69 : vector<8x128xf32>
    %c3_i32 = arith.constant 3 : i32
    %71 = arith.addi %3, %c3_i32 : i32
    %72 = arith.index_cast %71 : i32 to index
    %73 = memref.load %arg1[%72] : memref<12xf32, #tpu.memory_space<smem>>
    %c3_i32_33 = arith.constant 3 : i32
    %74 = arith.addi %3, %c3_i32_33 : i32
    %75 = arith.index_cast %74 : i32 to index
    %76 = memref.load %arg2[%75] : memref<12xf32, #tpu.memory_space<smem>>
    %c3 = arith.constant 3 : index
    %c0_34 = arith.constant 0 : index
    %c0_35 = arith.constant 0 : index
    %77 = vector.load %arg3[%c3, %c0_34, %c0_35] : memref<4x2x128xf32, #tpu.memory_space<vmem>>, vector<1x1x128xf32>
    %78 = vector.shape_cast %77 : vector<1x1x128xf32> to vector<1x128xf32>
    %c3_36 = arith.constant 3 : index
    %c1_37 = arith.constant 1 : index
    %c0_38 = arith.constant 0 : index
    %79 = vector.load %arg3[%c3_36, %c1_37, %c0_38] : memref<4x2x128xf32, #tpu.memory_space<vmem>>, vector<1x1x128xf32>
    %80 = vector.shape_cast %79 : vector<1x1x128xf32> to vector<1x128xf32>
    %c3_39 = arith.constant 3 : index
    %c0_40 = arith.constant 0 : index
    %c0_41 = arith.constant 0 : index
    %81 = vector.load %arg4[%c3_39, %c0_40, %c0_41] : memref<4x128x128xbf16, #tpu.memory_space<vmem>>, vector<1x128x128xbf16>
    %82 = vector.shape_cast %81 : vector<1x128x128xbf16> to vector<128x128xbf16>
    %83 = arith.extf %82 : vector<128x128xbf16> to vector<128x128xf32>
    %cst_42 = arith.constant dense<0.000000e+00> : vector<8x128xf32>
    %84 = tpu.matmul %70, %83, %cst_42 {dimension_numbers = #tpu.dot_dimension_numbers<[1], [0], [0], [1], [0, 0, 1, 1], [], []>} : vector<8x128xf32>, vector<128x128xf32>, vector<8x128xf32> -> vector<8x128xf32>
    %85 = vector.broadcast %73 : f32 to vector<1x128xf32>
    %86 = arith.mulf %78, %85 : vector<1x128xf32>
    %87 = arith.addf %86, %80 : vector<1x128xf32>
    %88 = vector.broadcast %87 : vector<1x128xf32> to vector<8x128xf32>
    %89 = arith.mulf %70, %88 : vector<8x128xf32>
    %90 = vector.broadcast %76 : f32 to vector<8x128xf32>
    %91 = arith.mulf %84, %90 : vector<8x128xf32>
    %92 = arith.addf %89, %91 : vector<8x128xf32>
    %c0_43 = arith.constant 0 : index
    %c0_44 = arith.constant 0 : index
    %93 = vector.load %arg6[%c0_43, %c0_44] : memref<8x128xf32, #tpu.memory_space<vmem>>, vector<8x128xf32>
    tpu.vector_store %arg6[%c0_43, %c0_44], %92 {strides = array<i32>} : memref<8x128xf32, #tpu.memory_space<vmem>>, vector<8x128xf32>,
    return
  }
  func.func @transform_0(%arg0: i32, %arg1: memref<12xf32, #tpu.memory_space<smem>>, %arg2: memref<12xf32, #tpu.memory_space<smem>>) -> (i32, i32, i32) {
    %c0_i32 = arith.constant 0 : i32
    %c0_i32_0 = arith.constant 0 : i32
    %c0_i32_1 = arith.constant 0 : i32
    return %arg0, %c0_i32, %c0_i32_0 : i32, i32, i32
  }
  func.func @transform_1(%arg0: i32, %arg1: memref<12xf32, #tpu.memory_space<smem>>, %arg2: memref<12xf32, #tpu.memory_space<smem>>) -> (i32, i32, i32) {
    %c0_i32 = arith.constant 0 : i32
    %c0_i32_0 = arith.constant 0 : i32
    %c0_i32_1 = arith.constant 0 : i32
    return %arg0, %c0_i32, %c0_i32_0 : i32, i32, i32
  }
  func.func @transform_2(%arg0: i32, %arg1: memref<12xf32, #tpu.memory_space<smem>>, %arg2: memref<12xf32, #tpu.memory_space<smem>>) -> (i32, i32) {
    %c0_i32 = arith.constant 0 : i32
    %c0_i32_0 = arith.constant 0 : i32
    %c0_i32_1 = arith.constant 0 : i32
    return %c0_i32, %c0_i32_0 : i32, i32
  }
  func.func @transform_3(%arg0: i32, %arg1: memref<12xf32, #tpu.memory_space<smem>>, %arg2: memref<12xf32, #tpu.memory_space<smem>>) -> (i32, i32) {
    %c0_i32 = arith.constant 0 : i32
    %c0_i32_0 = arith.constant 0 : i32
    %c0_i32_1 = arith.constant 0 : i32
    return %c0_i32, %c0_i32_0 : i32, i32
  }
}

</mosaic_0001>

<llo_original>
// kernel: tpu_custom_call.1
$region0: #{tpu_custom_call.1}
  #allocation0 [shape = 'u32[]', space=smem, size = 0x4, offset = 0x4, fixed_abs, tag = 'smem constant byte address 0x4 - core index']
  #allocation1 [shape = 'u32[144,128]{1,0:T(1,128)}', space=vmem, size = 0x12000, scoped, tag = 'internal scratch']
  #allocation2 [shape = 's32[1]{0}', space=sflag, size = 0x4, scoped, tag = 'scoped memory for tpu_custom_call.1']
  #allocation3 [shape = 'u8[512]{0}', space=smem, size = 0x200, scoped, tag = 'prefetched SMEM operand 0']
  #allocation4 [shape = 'u8[512]{0}', space=smem, size = 0x200, scoped, tag = 'prefetched SMEM operand 1']
  %s0 = inlined_call_operand.hbm [shape: f32[12], index: 0, kind: input, shape index: {}]
  %s1 = inlined_call_operand.vmem [shape: f32[12], index: 1, kind: input, shape index: {}]
  %s2 = inlined_call_operand.hbm [shape: f32[12,2,128], index: 2, kind: input, shape index: {}]
  %s3 = inlined_call_operand.hbm [shape: bf16[12,128,128], index: 3, kind: input, shape index: {}]
  %s4 = inlined_call_operand.vmem [shape: f32[8,128], index: 4, kind: input, shape index: {}]
  %s5 = inlined_call_operand.hbm [shape: f32[8,128], index: 5, kind: output, shape index: {}]
  %s6 = sld [smem:[#allocation0]]
  $region57: #{tpu_custom_call.1} parent=0
    _
  %s8 = ssub.s32 1, %s6
  %s9 = scalar_select 0, %s8, %s6
  %11 = dma.hbm_to_smem %s0, 16, [#allocation3], [#allocation2]
  %s12 = sshll.u32 %s1, 4
  %s13 = int_to_ptr.vmem [resolvable:$true] %s12
  %15 = dma.vmem_to_smem %s13, 16, [#allocation4], [#allocation2]
  %16 = dma.done [#allocation2], 32
  %17 = sfence
  $region1: #{tpu_custom_call.1} parent=0
    #allocation5 [shape = 'u8[8192]{0}', space=vmem, size = 0x2000, scoped, tag = 'input window, operand 2']
    #allocation6 [shape = 's32[2]{0}', space=sflag, size = 0x8, scoped, tag = 'scoped memory for tpu_custom_call.1']
    #allocation7 [shape = 's32[2]{0}', space=sflag, size = 0x8, scoped, tag = 'scoped memory for tpu_custom_call.1']
    #allocation8 [shape = 'u8[262144]{0}', space=vmem, size = 0x40000, scoped, tag = 'input window, operand 3']
    #allocation9 [shape = 's32[2]{0}', space=sflag, size = 0x8, scoped, tag = 'scoped memory for tpu_custom_call.1']
    #allocation10 [shape = 'u8[4096]{0}', space=vmem, size = 0x1000, scoped, tag = 'output window, operand 0, single buffered']
    %18 = vsyncpa [#allocation6], 0
    %s19 = scalar_lea.sflag [#allocation6], 1
    %20 = vsyncpa %s19, 0
    %21 = vsyncpa [#allocation9], 0
    %s22 = scalar_lea.sflag [#allocation9], 1
    %23 = vsyncpa %s22, 0
    %24 = vsyncpa [#allocation7], 0
    loop: start=0, step=1, limit=5
    $region2: #{tpu_custom_call.1} parent=1 // loop_pre_header
      _
    $region3: #{tpu_custom_call.1} parent=1 // loop_header
      %s26 = sphi 0, %s30
      %p27 = scmp.ge.s32.totalorder %s26, 5
      %s36 = sphi 0, %s38
      %s39 = sphi 0, %s36
      %s40 = sphi 0, %s39
      %s56 = sphi 0, %s40
      %s62 = sphi 0, %s64
      %s65 = sphi 0, %s62
      %s66 = sphi 0, %s65
      %s82 = sphi 0, %s66
      %s86 = sphi 0, %s86
      %s88 = sphi 0, %s86
      %s89 = sphi 0, %s88
      %s103 = sphi 0, %s89
      %s107 = sphi 0, %s107
      %s109 = sphi 0, %s107
      %s110 = sphi 0, %s109
      %s124 = sphi 0, %s110
    $region4: #{tpu_custom_call.1} parent=1 // loop_header_branch
      %29 = sbr.rel (%p27) target = $region8
    $region5: #{tpu_custom_call.1} parent=1 // loop_body
      %s31 = ssub.s32 %s26, 1
      %s32 = ssub.s32 %s26, 2
      %s33 = sadd.s32 %s26, 1
      %s34 = ssub.s32 %s26, %s33
      %p35 = scmp.eq.s32.totalorder %s34, 0
      %s37 = sadd.s32 %s36, 1
      %s38 = scalar_select %p35, %s36, %s37
      %p41 = pneg %p35
      %p42 = scmp.eq.s32.totalorder %s26, 2
      %p43 = por %p41, %p42
      %p44 = scmp.ne.s32.totalorder %s36, %s39
      %p45 = scmp.eq.s32.totalorder %s26, 0
      %p46 = por %p44, %p45
      %p47 = scmp.ne.s32.totalorder %s36, %s39
      %p48 = scmp.eq.s32.totalorder %s31, 2
      %p49 = por %p47, %p48
      %p50 = scmp.ne.s32.totalorder %s39, %s40
      %p51 = scmp.eq.s32.totalorder %s31, 0
      %p52 = por %p50, %p51
      %p53 = scmp.ne.s32.totalorder %s39, %s40
      %p54 = scmp.eq.s32.totalorder %s32, 2
      %p55 = por %p53, %p54
      %p57 = scmp.ne.s32.totalorder %s40, %s56
      %p58 = scmp.eq.s32.totalorder %s32, 0
      %p59 = por %p57, %p58
      %s60 = ssub.s32 %s26, %s33
      %p61 = scmp.eq.s32.totalorder %s60, 0
      %s63 = sadd.s32 %s62, 1
      %s64 = scalar_select %p61, %s62, %s63
      %p67 = pneg %p61
      %p68 = scmp.eq.s32.totalorder %s26, 2
      %p69 = por %p67, %p68
      %p70 = scmp.ne.s32.totalorder %s62, %s65
      %p71 = scmp.eq.s32.totalorder %s26, 0
      %p72 = por %p70, %p71
      %p73 = scmp.ne.s32.totalorder %s62, %s65
      %p74 = scmp.eq.s32.totalorder %s31, 2
      %p75 = por %p73, %p74
      %p76 = scmp.ne.s32.totalorder %s65, %s66
      %p77 = scmp.eq.s32.totalorder %s31, 0
      %p78 = por %p76, %p77
      %p79 = scmp.ne.s32.totalorder %s65, %s66
      %p80 = scmp.eq.s32.totalorder %s32, 2
      %p81 = por %p79, %p80
      %p83 = scmp.ne.s32.totalorder %s66, %s82
      %p84 = scmp.eq.s32.totalorder %s32, 0
      %p85 = por %p83, %p84
      %s87 = sadd.s32 %s86, 1
      %p90 = scmp.eq.s32.totalorder %s26, 2
      %p91 = scmp.ne.s32.totalorder %s86, %s88
      %p92 = scmp.eq.s32.totalorder %s26, 0
      %p93 = por %p91, %p92
      %p94 = scmp.ne.s32.totalorder %s86, %s88
      %p95 = scmp.eq.s32.totalorder %s31, 2
      %p96 = por %p94, %p95
      %p97 = scmp.ne.s32.totalorder %s88, %s89
      %p98 = scmp.eq.s32.totalorder %s31, 0
      %p99 = por %p97, %p98
      %p100 = scmp.ne.s32.totalorder %s88, %s89
      %p101 = scmp.eq.s32.totalorder %s32, 2
      %p102 = por %p100, %p101
      %p104 = scmp.ne.s32.totalorder %s89, %s103
      %p105 = scmp.eq.s32.totalorder %s32, 0
      %p106 = por %p104, %p105
      %s108 = sadd.s32 %s107, 1
      %p111 = scmp.eq.s32.totalorder %s26, 2
      %p112 = scmp.ne.s32.totalorder %s107, %s109
      %p113 = scmp.eq.s32.totalorder %s26, 0
      %p114 = por %p112, %p113
      %p115 = scmp.ne.s32.totalorder %s107, %s109
      %p116 = scmp.eq.s32.totalorder %s31, 2
      %p117 = por %p115, %p116
      %p118 = scmp.ne.s32.totalorder %s109, %s110
      %p119 = scmp.eq.s32.totalorder %s31, 0
      %p120 = por %p118, %p119
      %p121 = scmp.ne.s32.totalorder %s109, %s110
      %p122 = scmp.eq.s32.totalorder %s32, 2
      %p123 = por %p121, %p122
      %p125 = scmp.ne.s32.totalorder %s110, %s124
      %p126 = scmp.eq.s32.totalorder %s32, 0
      %p127 = por %p125, %p126
      %p128 = scmp.le.s32.totalorder 1, %s26
      %p129 = scmp.lt.s32.totalorder %s26, 4
      %p130 = pnand %p128, %p129
      %p131 = pneg %p130
      // Predicated region
      $region9: #{tpu_custom_call.1} parent=5 // pred_check
        _
      $region10: #{tpu_custom_call.1} parent=5 // pred_check_branch
        %133 = sbr.rel (%p130) target = $region12
      $region11: #{tpu_custom_call.1} parent=5 // pred_region
        %s134 = ssub.s32 %s26, 1
        // Predicated region
        $region13: #{tpu_custom_call.1} parent=11 // pred_check
          %p135 = pneg %p99
        $region14: #{tpu_custom_call.1} parent=11 // pred_check_branch
          %137 = sbr.rel (%p135) target = $region16
        $region15: #{tpu_custom_call.1} parent=11 // pred_region
          _
        $region16: #{tpu_custom_call.1} parent=11 // pred_fallthru
          _
      $region12: #{tpu_custom_call.1} parent=5 // pred_fallthru
        _
      %p138 = scmp.lt.s32.totalorder %s26, 3
      // Predicated region
      $region17: #{tpu_custom_call.1} parent=5 // pred_check
        %p139 = pneg %p138
      $region18: #{tpu_custom_call.1} parent=5 // pred_check_branch
        %141 = sbr.rel (%p139) target = $region20
      $region19: #{tpu_custom_call.1} parent=5 // pred_region
        // Predicated region
        $region21: #{tpu_custom_call.1} parent=19 // pred_check
          %p142 = pneg %p46
        $region22: #{tpu_custom_call.1} parent=19 // pred_check_branch
          %144 = sbr.rel (%p142) target = $region24
        $region23: #{tpu_custom_call.1} parent=19 // pred_region
          %s145 = sand.u32 %s36, 1
          %s146 = scalar_lea.sflag [#allocation6], %s145
          %s147 = sand.u32 %s36, 1
          %s148 = smul.addr %s147, 8
          %s149 = scalar_lea.vmem [#allocation5], %s148
          %s150 = smul.u32 4, %s26
          %s152 = ssub.s32 128, 128
          %153 = vsyncadd %s146, %s152
          %s154 = smul.addr %s150, 32
          %s155 = scalar_lea.hbm %s2, %s154
          %s156 = sshll.u32 %s149, 4
          %s157 = int_to_ptr.vmem [resolvable:$true] %s156
          %162 = dma.hbm_to_vmem [thread:$0]  %s155, 128, %s157, %s146, 32, 32, 2
        $region24: #{tpu_custom_call.1} parent=19 // pred_fallthru
          _
        // Predicated region
        $region25: #{tpu_custom_call.1} parent=19 // pred_check
          %p163 = pneg %p72
        $region26: #{tpu_custom_call.1} parent=19 // pred_check_branch
          %165 = sbr.rel (%p163) target = $region28
        $region27: #{tpu_custom_call.1} parent=19 // pred_region
          %s166 = sand.u32 %s62, 1
          %s167 = scalar_lea.sflag [#allocation9], %s166
          %s168 = sand.u32 %s62, 1
          %s169 = smul.addr %s168, 256
          %s170 = scalar_lea.vmem [#allocation8], %s169
          %s171 = smul.u32 4, %s26
          %s173 = ssub.s32 4096, 4096
          %174 = vsyncadd %s167, %s173
          %s175 = smul.addr %s171, 16
          %s176 = smul.addr %s175, 64
          %s177 = scalar_lea.hbm %s3, %s176
          %s178 = sshll.u32 %s170, 4
          %s179 = int_to_ptr.vmem [resolvable:$true] %s178
          %184 = dma.hbm_to_vmem [thread:$0]  %s177, 4096, %s179, %s167, 64, 64, 4
        $region28: #{tpu_custom_call.1} parent=19 // pred_fallthru
          _
      $region20: #{tpu_custom_call.1} parent=5 // pred_fallthru
        _
      %p185 = scmp.le.s32.totalorder 1, %s26
      %p186 = scmp.lt.s32.totalorder %s26, 4
      %p187 = pnand %p185, %p186
      %p188 = pneg %p187
      // Predicated region
      $region29: #{tpu_custom_call.1} parent=5 // pred_check
        _
      $region30: #{tpu_custom_call.1} parent=5 // pred_check_branch
        %190 = sbr.rel (%p187) target = $region32
      $region31: #{tpu_custom_call.1} parent=5 // pred_region
        %s191 = ssub.s32 %s26, 1
        %s192 = sand.u32 %s39, 1
        %s193 = scalar_lea.sflag [#allocation6], %s192
        %s194 = sand.u32 %s39, 1
        %s195 = smul.addr %s194, 8
        %s196 = scalar_lea.vmem [#allocation5], %s195
        // Predicated region
        $region33: #{tpu_custom_call.1} parent=31 // pred_check
          %p197 = pneg %p52
        $region34: #{tpu_custom_call.1} parent=31 // pred_check_branch
          %199 = sbr.rel (%p197) target = $region36
        $region35: #{tpu_custom_call.1} parent=31 // pred_region
          %200 = dma.done %s193, 128
        $region36: #{tpu_custom_call.1} parent=31 // pred_fallthru
          _
        %s201 = sand.u32 %s65, 1
        %s202 = scalar_lea.sflag [#allocation9], %s201
        %s203 = sand.u32 %s65, 1
        %s204 = smul.addr %s203, 256
        %s205 = scalar_lea.vmem [#allocation8], %s204
        // Predicated region
        $region37: #{tpu_custom_call.1} parent=31 // pred_check
          %p206 = pneg %p78
        $region38: #{tpu_custom_call.1} parent=31 // pred_check_branch
          %208 = sbr.rel (%p206) target = $region40
        $region39: #{tpu_custom_call.1} parent=31 // pred_region
          %209 = dma.done %s202, 4096
        $region40: #{tpu_custom_call.1} parent=31 // pred_fallthru
          _
        %s210 = sand.u32 %s39, 1
        %s211 = scalar_lea.sflag [#allocation6], %s210
        %s212 = sand.u32 %s39, 1
        %s213 = smul.addr %s212, 8
        %s214 = scalar_lea.vmem [#allocation5], %s213
        %p215 = pneg %p52
        %p216 = pneg %p49
        %s217 = sand.u32 %s65, 1
        %s218 = scalar_lea.sflag [#allocation9], %s217
        %s219 = sand.u32 %s65, 1
        %s220 = smul.addr %s219, 256
        %s221 = scalar_lea.vmem [#allocation8], %s220
        %p222 = pneg %p78
        %p223 = pneg %p75
        %p224 = pneg %p99
        %p225 = pneg %p96
        %p226 = pneg %p120
        %p227 = pneg %p117
        %s228 = smul.u32 4, %s31
        %s229 = smul.u32 4, %s31
        %p230 = scmp.eq.s32.totalorder %s31, 0
        // Predicated region
        $region41: #{tpu_custom_call.1} parent=31 // pred_check
          %p231 = pneg %p230
        $region42: #{tpu_custom_call.1} parent=31 // pred_check_branch
          %233 = sbr.rel (%p231) target = $region44
        $region43: #{tpu_custom_call.1} parent=31 // pred_region
          %v234 = vld [vmem:[%s4] sm:$0xff]
          %235 = vst [vmem:[#allocation10] sm:$0xff] %v234
        $region44: #{tpu_custom_call.1} parent=31 // pred_fallthru
          _
        %s236 = smul.u32 %s31, 4
        %v237 = vld [vmem:[#allocation10] sm:$0xff]
        %s238 = sld [smem:[#allocation3 + %s236]]
        %s239 = sld [smem:[#allocation4 + %s236]]
        %v240 = vld [vmem:[%s196] sm:$0x1]
        %v241 = vld [vmem:[%s196 + $0x1] sm:$0x1]
        %v242 = vld [vmem:[%s205] sm:$0xf]
        %v243 = vld [vmem:[%s205 + $0x4] sm:$0xf]
        %v244 = vld [vmem:[%s205 + $0x8] sm:$0xf]
        %v245 = vld [vmem:[%s205 + $0xc] sm:$0xf]
        %v246 = vld [vmem:[%s205 + $0x10] sm:$0xf]
        %v247 = vld [vmem:[%s205 + $0x14] sm:$0xf]
        %v248 = vld [vmem:[%s205 + $0x18] sm:$0xf]
        %v249 = vld [vmem:[%s205 + $0x1c] sm:$0xf]
        %v250 = vld [vmem:[%s205 + $0x20] sm:$0xf]
        %v251 = vld [vmem:[%s205 + $0x24] sm:$0xf]
        %v252 = vld [vmem:[%s205 + $0x28] sm:$0xf]
        %v253 = vld [vmem:[%s205 + $0x2c] sm:$0xf]
        %v254 = vld [vmem:[%s205 + $0x30] sm:$0xf]
        %v255 = vld [vmem:[%s205 + $0x34] sm:$0xf]
        %v256 = vld [vmem:[%s205 + $0x38] sm:$0xf]
        %v257 = vld [vmem:[%s205 + $0x3c] sm:$0xf]
        %v258 = vunpack.c.l.bf16 %v242
        %v259 = vunpack.c.l.bf16 %v243
        %v260 = vunpack.c.l.bf16 %v244
        %v261 = vunpack.c.l.bf16 %v245
        %v262 = vunpack.c.l.bf16 %v246
        %v263 = vunpack.c.l.bf16 %v247
        %v264 = vunpack.c.l.bf16 %v248
        %v265 = vunpack.c.l.bf16 %v249
        %v266 = vunpack.c.l.bf16 %v250
        %v267 = vunpack.c.l.bf16 %v251
        %v268 = vunpack.c.l.bf16 %v252
        %v269 = vunpack.c.l.bf16 %v253
        %v270 = vunpack.c.l.bf16 %v254
        %v271 = vunpack.c.l.bf16 %v255
        %v272 = vunpack.c.l.bf16 %v256
        %v273 = vunpack.c.l.bf16 %v257
        %274 = vmatprep.subr.mxu0 0.0
        %275 = vmatpush1.msra.mxu0 %v258
        %276 = vmatprep.subr.mxu0 0.0
        %277 = vmatpush1.msra.mxu0 %v259
        %278 = vmatprep.subr.mxu0 0.0
        %279 = vmatpush1.msra.mxu0 %v260
        %280 = vmatprep.subr.mxu0 0.0
        %281 = vmatpush1.msra.mxu0 %v261
        %282 = vmatprep.subr.mxu0 0.0
        %283 = vmatpush1.msra.mxu0 %v262
        %284 = vmatprep.subr.mxu0 0.0
        %285 = vmatpush1.msra.mxu0 %v263
        %286 = vmatprep.subr.mxu0 0.0
        %287 = vmatpush1.msra.mxu0 %v264
        %288 = vmatprep.subr.mxu0 0.0
        %289 = vmatpush1.msra.mxu0 %v265
        %290 = vmatprep.subr.mxu0 0.0
        %291 = vmatpush1.msra.mxu0 %v266
        %292 = vmatprep.subr.mxu0 0.0
        %293 = vmatpush1.msra.mxu0 %v267
        %294 = vmatprep.subr.mxu0 0.0
        %295 = vmatpush1.msra.mxu0 %v268
        %296 = vmatprep.subr.mxu0 0.0
        %297 = vmatpush1.msra.mxu0 %v269
        %298 = vmatprep.subr.mxu0 0.0
        %299 = vmatpush1.msra.mxu0 %v270
        %300 = vmatprep.subr.mxu0 0.0
        %301 = vmatpush1.msra.mxu0 %v271
        %302 = vmatprep.subr.mxu0 0.0
        %303 = vmatpush1.msra.mxu0 %v272
        %304 = vmatprep.subr.mxu0 0.0
        %305 = vmatpush1.msra.mxu0 %v273
        %306 = vmatprep.subr.mxu0 0.0
        %307 = vmatpush1.msra.mxu0 0.0
        %308 = vmatprep.subr.mxu0 0.0
        %309 = vmatpush1.msra.mxu0 0.0
        %310 = vmatprep.subr.mxu0 0.0
        %311 = vmatpush1.msra.mxu0 0.0
        %312 = vmatprep.subr.mxu0 0.0
        %313 = vmatpush1.msra.mxu0 0.0
        %314 = vmatprep.subr.mxu0 0.0
        %315 = vmatpush1.msra.mxu0 0.0
        %316 = vmatprep.subr.mxu0 0.0
        %317 = vmatpush1.msra.mxu0 0.0
        %318 = vmatprep.subr.mxu0 0.0
        %319 = vmatpush1.msra.mxu0 0.0
        %320 = vmatprep.subr.mxu0 0.0
        %321 = vmatpush1.msra.mxu0 0.0
        %322 = vmatprep.subr.mxu0 0.0
        %323 = vmatpush1.msra.mxu0 0.0
        %324 = vmatprep.subr.mxu0 0.0
        %325 = vmatpush1.msra.mxu0 0.0
        %326 = vmatprep.subr.mxu0 0.0
        %327 = vmatpush1.msra.mxu0 0.0
        %328 = vmatprep.subr.mxu0 0.0
        %329 = vmatpush1.msra.mxu0 0.0
        %330 = vmatprep.subr.mxu0 0.0
        %331 = vmatpush1.msra.mxu0 0.0
        %332 = vmatprep.subr.mxu0 0.0
        %333 = vmatpush1.msra.mxu0 0.0
        %334 = vmatprep.subr.mxu0 0.0
        %335 = vmatpush1.msra.mxu0 0.0
        %336 = vmatprep.subr.mxu0 0.0
        %337 = vmatpush1.msra.mxu0 0.0
        %338 = vmatprep.mubr.f32.mxu0 0.0
        %339 = vmatmul.mubr.f32.gmra.mrb[0].mxu0 %v237
        %v340 = vpop.f32.mrb[0].mxu0
        %v341 = vadd.f32 0.0, %v340
        %v342 = vpop.f32.mrb[0].mxu0
        %343 = vdwg.mxu0
        %v344 = vstv %s238
        %v345 = vmul.f32 %v240, %v344
        %v346 = vadd.f32 %v345, %v241
        %v347 = vlaneseq
        %v348 = vshrl.u32 %v347, 7
        %v349 = vsub.s32 0, %v348
        %v350 = vrot.slane %v346, %v349
        %v351 = vmul.f32 %v237, %v350
        %v352 = vstv %s239
        %v353 = vmul.f32 %v341, %v352
        %v354 = vadd.f32 %v351, %v353
        %s355 = sadd.s32 %s236, 1
        %s356 = sld [smem:[#allocation3 + %s355]]
        %s357 = sld [smem:[#allocation4 + %s355]]
        %s358 = scalar_lea.vmem %s196, 2 [#allocation5]
        %v359 = vld [vmem:[%s358] sm:$0x1]
        %v360 = vld [vmem:[%s358 + $0x1] sm:$0x1]
        %s361 = scalar_lea.vmem %s205, 64 [#allocation8]
        %v362 = vld [vmem:[%s361] sm:$0xf]
        %v363 = vld [vmem:[%s361 + $0x4] sm:$0xf]
        %v364 = vld [vmem:[%s361 + $0x8] sm:$0xf]
        %v365 = vld [vmem:[%s361 + $0xc] sm:$0xf]
        %v366 = vld [vmem:[%s361 + $0x10] sm:$0xf]
        %v367 = vld [vmem:[%s361 + $0x14] sm:$0xf]
        %v368 = vld [vmem:[%s361 + $0x18] sm:$0xf]
        %v369 = vld [vmem:[%s361 + $0x1c] sm:$0xf]
        %v370 = vld [vmem:[%s361 + $0x20] sm:$0xf]
        %v371 = vld [vmem:[%s361 + $0x24] sm:$0xf]
        %v372 = vld [vmem:[%s361 + $0x28] sm:$0xf]
        %v373 = vld [vmem:[%s361 + $0x2c] sm:$0xf]
        %v374 = vld [vmem:[%s361 + $0x30] sm:$0xf]
        %v375 = vld [vmem:[%s361 + $0x34] sm:$0xf]
        %v376 = vld [vmem:[%s361 + $0x38] sm:$0xf]
        %v377 = vld [vmem:[%s361 + $0x3c] sm:$0xf]
        %v378 = vunpack.c.l.bf16 %v362
        %v379 = vunpack.c.l.bf16 %v363
        %v380 = vunpack.c.l.bf16 %v364
        %v381 = vunpack.c.l.bf16 %v365
        %v382 = vunpack.c.l.bf16 %v366
        %v383 = vunpack.c.l.bf16 %v367
        %v384 = vunpack.c.l.bf16 %v368
        %v385 = vunpack.c.l.bf16 %v369
        %v386 = vunpack.c.l.bf16 %v370
        %v387 = vunpack.c.l.bf16 %v371
        %v388 = vunpack.c.l.bf16 %v372
        %v389 = vunpack.c.l.bf16 %v373
        %v390 = vunpack.c.l.bf16 %v374
        %v391 = vunpack.c.l.bf16 %v375
        %v392 = vunpack.c.l.bf16 %v376
        %v393 = vunpack.c.l.bf16 %v377
        %394 = vmatprep.subr.mxu0 0.0
        %395 = vmatpush1.msra.mxu0 %v378
        %396 = vmatprep.subr.mxu0 0.0
        %397 = vmatpush1.msra.mxu0 %v379
        %398 = vmatprep.subr.mxu0 0.0
        %399 = vmatpush1.msra.mxu0 %v380
        %400 = vmatprep.subr.mxu0 0.0
        %401 = vmatpush1.msra.mxu0 %v381
        %402 = vmatprep.subr.mxu0 0.0
        %403 = vmatpush1.msra.mxu0 %v382
        %404 = vmatprep.subr.mxu0 0.0
        %405 = vmatpush1.msra.mxu0 %v383
        %406 = vmatprep.subr.mxu0 0.0
        %407 = vmatpush1.msra.mxu0 %v384
        %408 = vmatprep.subr.mxu0 0.0
        %409 = vmatpush1.msra.mxu0 %v385
        %410 = vmatprep.subr.mxu0 0.0
        %411 = vmatpush1.msra.mxu0 %v386
        %412 = vmatprep.subr.mxu0 0.0
        %413 = vmatpush1.msra.mxu0 %v387
        %414 = vmatprep.subr.mxu0 0.0
        %415 = vmatpush1.msra.mxu0 %v388
        %416 = vmatprep.subr.mxu0 0.0
        %417 = vmatpush1.msra.mxu0 %v389
        %418 = vmatprep.subr.mxu0 0.0
        %419 = vmatpush1.msra.mxu0 %v390
        %420 = vmatprep.subr.mxu0 0.0
        %421 = vmatpush1.msra.mxu0 %v391
        %422 = vmatprep.subr.mxu0 0.0
        %423 = vmatpush1.msra.mxu0 %v392
        %424 = vmatprep.subr.mxu0 0.0
        %425 = vmatpush1.msra.mxu0 %v393
        %426 = vmatprep.subr.mxu0 0.0
        %427 = vmatpush1.msra.mxu0 0.0
        %428 = vmatprep.subr.mxu0 0.0
        %429 = vmatpush1.msra.mxu0 0.0
        %430 = vmatprep.subr.mxu0 0.0
        %431 = vmatpush1.msra.mxu0 0.0
        %432 = vmatprep.subr.mxu0 0.0
        %433 = vmatpush1.msra.mxu0 0.0
        %434 = vmatprep.subr.mxu0 0.0
        %435 = vmatpush1.msra.mxu0 0.0
        %436 = vmatprep.subr.mxu0 0.0
        %437 = vmatpush1.msra.mxu0 0.0
        %438 = vmatprep.subr.mxu0 0.0
        %439 = vmatpush1.msra.mxu0 0.0
        %440 = vmatprep.subr.mxu0 0.0
        %441 = vmatpush1.msra.mxu0 0.0
        %442 = vmatprep.subr.mxu0 0.0
        %443 = vmatpush1.msra.mxu0 0.0
        %444 = vmatprep.subr.mxu0 0.0
        %445 = vmatpush1.msra.mxu0 0.0
        %446 = vmatprep.subr.mxu0 0.0
        %447 = vmatpush1.msra.mxu0 0.0
        %448 = vmatprep.subr.mxu0 0.0
        %449 = vmatpush1.msra.mxu0 0.0
        %450 = vmatprep.subr.mxu0 0.0
        %451 = vmatpush1.msra.mxu0 0.0
        %452 = vmatprep.subr.mxu0 0.0
        %453 = vmatpush1.msra.mxu0 0.0
        %454 = vmatprep.subr.mxu0 0.0
        %455 = vmatpush1.msra.mxu0 0.0
        %456 = vmatprep.subr.mxu0 0.0
        %457 = vmatpush1.msra.mxu0 0.0
        %458 = vmatprep.mubr.f32.mxu0 0.0
        %459 = vmatmul.mubr.f32.gmra.mrb[0].mxu0 %v354
        %v460 = vpop.f32.mrb[0].mxu0
        %v461 = vadd.f32 0.0, %v460
        %v462 = vpop.f32.mrb[0].mxu0
        %463 = vdwg.mxu0
        %v464 = vstv %s356
        %v465 = vmul.f32 %v359, %v464
        %v466 = vadd.f32 %v465, %v360
        %v467 = vlaneseq
        %v468 = vshrl.u32 %v467, 7
        %v469 = vsub.s32 0, %v468
        %v470 = vrot.slane %v466, %v469
        %v471 = vmul.f32 %v354, %v470
        %v472 = vstv %s357
        %v473 = vmul.f32 %v461, %v472
        %v474 = vadd.f32 %v471, %v473
        %s475 = sadd.s32 %s236, 2
        %s476 = sld [smem:[#allocation3 + %s475]]
        %s477 = sld [smem:[#allocation4 + %s475]]
        %s478 = scalar_lea.vmem %s196, 4 [#allocation5]
        %v479 = vld [vmem:[%s478] sm:$0x1]
        %v480 = vld [vmem:[%s478 + $0x1] sm:$0x1]
        %s481 = scalar_lea.vmem %s205, 128 [#allocation8]
        %v482 = vld [vmem:[%s481] sm:$0xf]
        %v483 = vld [vmem:[%s481 + $0x4] sm:$0xf]
        %v484 = vld [vmem:[%s481 + $0x8] sm:$0xf]
        %v485 = vld [vmem:[%s481 + $0xc] sm:$0xf]
        %v486 = vld [vmem:[%s481 + $0x10] sm:$0xf]
        %v487 = vld [vmem:[%s481 + $0x14] sm:$0xf]
        %v488 = vld [vmem:[%s481 + $0x18] sm:$0xf]
        %v489 = vld [vmem:[%s481 + $0x1c] sm:$0xf]
        %v490 = vld [vmem:[%s481 + $0x20] sm:$0xf]
        %v491 = vld [vmem:[%s481 + $0x24] sm:$0xf]
        %v492 = vld [vmem:[%s481 + $0x28] sm:$0xf]
        %v493 = vld [vmem:[%s481 + $0x2c] sm:$0xf]
        %v494 = vld [vmem:[%s481 + $0x30] sm:$0xf]
        %v495 = vld [vmem:[%s481 + $0x34] sm:$0xf]
        %v496 = vld [vmem:[%s481 + $0x38] sm:$0xf]
        %v497 = vld [vmem:[%s481 + $0x3c] sm:$0xf]
        %v498 = vunpack.c.l.bf16 %v482
        %v499 = vunpack.c.l.bf16 %v483
        %v500 = vunpack.c.l.bf16 %v484
        %v501 = vunpack.c.l.bf16 %v485
        %v502 = vunpack.c.l.bf16 %v486
        %v503 = vunpack.c.l.bf16 %v487
        %v504 = vunpack.c.l.bf16 %v488
        %v505 = vunpack.c.l.bf16 %v489
        %v506 = vunpack.c.l.bf16 %v490
        %v507 = vunpack.c.l.bf16 %v491
        %v508 = vunpack.c.l.bf16 %v492
        %v509 = vunpack.c.l.bf16 %v493
        %v510 = vunpack.c.l.bf16 %v494
        %v511 = vunpack.c.l.bf16 %v495
        %v512 = vunpack.c.l.bf16 %v496
        %v513 = vunpack.c.l.bf16 %v497
        %514 = vmatprep.subr.mxu0 0.0
        %515 = vmatpush1.msra.mxu0 %v498
        %516 = vmatprep.subr.mxu0 0.0
        %517 = vmatpush1.msra.mxu0 %v499
        %518 = vmatprep.subr.mxu0 0.0
        %519 = vmatpush1.msra.mxu0 %v500
        %520 = vmatprep.subr.mxu0 0.0
        %521 = vmatpush1.msra.mxu0 %v501
        %522 = vmatprep.subr.mxu0 0.0
        %523 = vmatpush1.msra.mxu0 %v502
        %524 = vmatprep.subr.mxu0 0.0
        %525 = vmatpush1.msra.mxu0 %v503
        %526 = vmatprep.subr.mxu0 0.0
        %527 = vmatpush1.msra.mxu0 %v504
        %528 = vmatprep.subr.mxu0 0.0
        %529 = vmatpush1.msra.mxu0 %v505
        %530 = vmatprep.subr.mxu0 0.0
        %531 = vmatpush1.msra.mxu0 %v506
        %532 = vmatprep.subr.mxu0 0.0
        %533 = vmatpush1.msra.mxu0 %v507
        %534 = vmatprep.subr.mxu0 0.0
        %535 = vmatpush1.msra.mxu0 %v508
        %536 = vmatprep.subr.mxu0 0.0
        %537 = vmatpush1.msra.mxu0 %v509
        %538 = vmatprep.subr.mxu0 0.0
        %539 = vmatpush1.msra.mxu0 %v510
        %540 = vmatprep.subr.mxu0 0.0
        %541 = vmatpush1.msra.mxu0 %v511
        %542 = vmatprep.subr.mxu0 0.0
        %543 = vmatpush1.msra.mxu0 %v512
        %544 = vmatprep.subr.mxu0 0.0
        %545 = vmatpush1.msra.mxu0 %v513
        %546 = vmatprep.subr.mxu0 0.0
        %547 = vmatpush1.msra.mxu0 0.0
        %548 = vmatprep.subr.mxu0 0.0
        %549 = vmatpush1.msra.mxu0 0.0
        %550 = vmatprep.subr.mxu0 0.0
        %551 = vmatpush1.msra.mxu0 0.0
        %552 = vmatprep.subr.mxu0 0.0
        %553 = vmatpush1.msra.mxu0 0.0
        %554 = vmatprep.subr.mxu0 0.0
        %555 = vmatpush1.msra.mxu0 0.0
        %556 = vmatprep.subr.mxu0 0.0
        %557 = vmatpush1.msra.mxu0 0.0
        %558 = vmatprep.subr.mxu0 0.0
        %559 = vmatpush1.msra.mxu0 0.0
        %560 = vmatprep.subr.mxu0 0.0
        %561 = vmatpush1.msra.mxu0 0.0
        %562 = vmatprep.subr.mxu0 0.0
        %563 = vmatpush1.msra.mxu0 0.0
        %564 = vmatprep.subr.mxu0 0.0
        %565 = vmatpush1.msra.mxu0 0.0
        %566 = vmatprep.subr.mxu0 0.0
        %567 = vmatpush1.msra.mxu0 0.0
        %568 = vmatprep.subr.mxu0 0.0
        %569 = vmatpush1.msra.mxu0 0.0
        %570 = vmatprep.subr.mxu0 0.0
        %571 = vmatpush1.msra.mxu0 0.0
        %572 = vmatprep.subr.mxu0 0.0
        %573 = vmatpush1.msra.mxu0 0.0
        %574 = vmatprep.subr.mxu0 0.0
        %575 = vmatpush1.msra.mxu0 0.0
        %576 = vmatprep.subr.mxu0 0.0
        %577 = vmatpush1.msra.mxu0 0.0
        %578 = vmatprep.mubr.f32.mxu0 0.0
        %579 = vmatmul.mubr.f32.gmra.mrb[0].mxu0 %v474
        %v580 = vpop.f32.mrb[0].mxu0
        %v581 = vadd.f32 0.0, %v580
        %v582 = vpop.f32.mrb[0].mxu0
        %583 = vdwg.mxu0
        %v584 = vstv %s476
        %v585 = vmul.f32 %v479, %v584
        %v586 = vadd.f32 %v585, %v480
        %v587 = vlaneseq
        %v588 = vshrl.u32 %v587, 7
        %v589 = vsub.s32 0, %v588
        %v590 = vrot.slane %v586, %v589
        %v591 = vmul.f32 %v474, %v590
        %v592 = vstv %s477
        %v593 = vmul.f32 %v581, %v592
        %v594 = vadd.f32 %v591, %v593
        %s595 = sadd.s32 %s236, 3
        %s596 = sld [smem:[#allocation3 + %s595]]
        %s597 = sld [smem:[#allocation4 + %s595]]
        %s598 = scalar_lea.vmem %s196, 6 [#allocation5]
        %v599 = vld [vmem:[%s598] sm:$0x1]
        %v600 = vld [vmem:[%s598 + $0x1] sm:$0x1]
        %s601 = scalar_lea.vmem %s205, 192 [#allocation8]
        %v602 = vld [vmem:[%s601] sm:$0xf]
        %v603 = vld [vmem:[%s601 + $0x4] sm:$0xf]
        %v604 = vld [vmem:[%s601 + $0x8] sm:$0xf]
        %v605 = vld [vmem:[%s601 + $0xc] sm:$0xf]
        %v606 = vld [vmem:[%s601 + $0x10] sm:$0xf]
        %v607 = vld [vmem:[%s601 + $0x14] sm:$0xf]
        %v608 = vld [vmem:[%s601 + $0x18] sm:$0xf]
        %v609 = vld [vmem:[%s601 + $0x1c] sm:$0xf]
        %v610 = vld [vmem:[%s601 + $0x20] sm:$0xf]
        %v611 = vld [vmem:[%s601 + $0x24] sm:$0xf]
        %v612 = vld [vmem:[%s601 + $0x28] sm:$0xf]
        %v613 = vld [vmem:[%s601 + $0x2c] sm:$0xf]
        %v614 = vld [vmem:[%s601 + $0x30] sm:$0xf]
        %v615 = vld [vmem:[%s601 + $0x34] sm:$0xf]
        %v616 = vld [vmem:[%s601 + $0x38] sm:$0xf]
        %v617 = vld [vmem:[%s601 + $0x3c] sm:$0xf]
        %v618 = vunpack.c.l.bf16 %v602
        %v619 = vunpack.c.l.bf16 %v603
        %v620 = vunpack.c.l.bf16 %v604
        %v621 = vunpack.c.l.bf16 %v605
        %v622 = vunpack.c.l.bf16 %v606
        %v623 = vunpack.c.l.bf16 %v607
        %v624 = vunpack.c.l.bf16 %v608
        %v625 = vunpack.c.l.bf16 %v609
        %v626 = vunpack.c.l.bf16 %v610
        %v627 = vunpack.c.l.bf16 %v611
        %v628 = vunpack.c.l.bf16 %v612
        %v629 = vunpack.c.l.bf16 %v613
        %v630 = vunpack.c.l.bf16 %v614
        %v631 = vunpack.c.l.bf16 %v615
        %v632 = vunpack.c.l.bf16 %v616
        %v633 = vunpack.c.l.bf16 %v617
        %634 = vmatprep.subr.mxu0 0.0
        %635 = vmatpush1.msra.mxu0 %v618
        %636 = vmatprep.subr.mxu0 0.0
        %637 = vmatpush1.msra.mxu0 %v619
        %638 = vmatprep.subr.mxu0 0.0
        %639 = vmatpush1.msra.mxu0 %v620
        %640 = vmatprep.subr.mxu0 0.0
        %641 = vmatpush1.msra.mxu0 %v621
        %642 = vmatprep.subr.mxu0 0.0
        %643 = vmatpush1.msra.mxu0 %v622
        %644 = vmatprep.subr.mxu0 0.0
        %645 = vmatpush1.msra.mxu0 %v623
        %646 = vmatprep.subr.mxu0 0.0
        %647 = vmatpush1.msra.mxu0 %v624
        %648 = vmatprep.subr.mxu0 0.0
        %649 = vmatpush1.msra.mxu0 %v625
        %650 = vmatprep.subr.mxu0 0.0
        %651 = vmatpush1.msra.mxu0 %v626
        %652 = vmatprep.subr.mxu0 0.0
        %653 = vmatpush1.msra.mxu0 %v627
        %654 = vmatprep.subr.mxu0 0.0
        %655 = vmatpush1.msra.mxu0 %v628
        %656 = vmatprep.subr.mxu0 0.0
        %657 = vmatpush1.msra.mxu0 %v629
        %658 = vmatprep.subr.mxu0 0.0
        %659 = vmatpush1.msra.mxu0 %v630
        %660 = vmatprep.subr.mxu0 0.0
        %661 = vmatpush1.msra.mxu0 %v631
        %662 = vmatprep.subr.mxu0 0.0
        %663 = vmatpush1.msra.mxu0 %v632
        %664 = vmatprep.subr.mxu0 0.0
        %665 = vmatpush1.msra.mxu0 %v633
        %666 = vmatprep.subr.mxu0 0.0
        %667 = vmatpush1.msra.mxu0 0.0
        %668 = vmatprep.subr.mxu0 0.0
        %669 = vmatpush1.msra.mxu0 0.0
        %670 = vmatprep.subr.mxu0 0.0
        %671 = vmatpush1.msra.mxu0 0.0
        %672 = vmatprep.subr.mxu0 0.0
        %673 = vmatpush1.msra.mxu0 0.0
        %674 = vmatprep.subr.mxu0 0.0
        %675 = vmatpush1.msra.mxu0 0.0
        %676 = vmatprep.subr.mxu0 0.0
        %677 = vmatpush1.msra.mxu0 0.0
        %678 = vmatprep.subr.mxu0 0.0
        %679 = vmatpush1.msra.mxu0 0.0
        %680 = vmatprep.subr.mxu0 0.0
        %681 = vmatpush1.msra.mxu0 0.0
        %682 = vmatprep.subr.mxu0 0.0
        %683 = vmatpush1.msra.mxu0 0.0
        %684 = vmatprep.subr.mxu0 0.0
        %685 = vmatpush1.msra.mxu0 0.0
        %686 = vmatprep.subr.mxu0 0.0
        %687 = vmatpush1.msra.mxu0 0.0
        %688 = vmatprep.subr.mxu0 0.0
        %689 = vmatpush1.msra.mxu0 0.0
        %690 = vmatprep.subr.mxu0 0.0
        %691 = vmatpush1.msra.mxu0 0.0
        %692 = vmatprep.subr.mxu0 0.0
        %693 = vmatpush1.msra.mxu0 0.0
        %694 = vmatprep.subr.mxu0 0.0
        %695 = vmatpush1.msra.mxu0 0.0
        %696 = vmatprep.subr.mxu0 0.0
        %697 = vmatpush1.msra.mxu0 0.0
        %698 = vmatprep.mubr.f32.mxu0 0.0
        %699 = vmatmul.mubr.f32.gmra.mrb[0].mxu0 %v594
        %v700 = vpop.f32.mrb[0].mxu0
        %v701 = vadd.f32 0.0, %v700
        %v702 = vpop.f32.mrb[0].mxu0
        %703 = vdwg.mxu0
        %v704 = vstv %s596
        %v705 = vmul.f32 %v599, %v704
        %v706 = vadd.f32 %v705, %v600
        %v707 = vlaneseq
        %v708 = vshrl.u32 %v707, 7
        %v709 = vsub.s32 0, %v708
        %v710 = vrot.slane %v706, %v709
        %v711 = vmul.f32 %v594, %v710
        %v712 = vstv %s597
        %v713 = vmul.f32 %v701, %v712
        %v714 = vadd.f32 %v711, %v713
        %715 = vst [vmem:[#allocation10] sm:$0xff] %v714
        // Predicated region
        $region45: #{tpu_custom_call.1} parent=31 // pred_check
          %p716 = pneg %p117
        $region46: #{tpu_custom_call.1} parent=31 // pred_check_branch
          %718 = sbr.rel (%p716) target = $region48
        $region47: #{tpu_custom_call.1} parent=31 // pred_region
          %s720 = ssub.s32 128, 128
          %721 = vsyncadd [#allocation7], %s720
          %s723 = sshll.u32 [#allocation10], 4
          %s724 = int_to_ptr.vmem [resolvable:$true] %s723
          %726 = dma.vmem_to_hbm [thread:$0]  %s724, 128, %s5, [#allocation7]
        $region48: #{tpu_custom_call.1} parent=31 // pred_fallthru
          _
        // Predicated region
        $region49: #{tpu_custom_call.1} parent=31 // pred_check
          %p727 = pneg %p117
        $region50: #{tpu_custom_call.1} parent=31 // pred_check_branch
          %729 = sbr.rel (%p727) target = $region52
        $region51: #{tpu_custom_call.1} parent=31 // pred_region
          %730 = dma.done [#allocation7], 128
        $region52: #{tpu_custom_call.1} parent=31 // pred_fallthru
          _
      $region32: #{tpu_custom_call.1} parent=5 // pred_fallthru
        _
      %p731 = scmp.le.s32.totalorder 2, %s26
      // Predicated region
      $region53: #{tpu_custom_call.1} parent=5 // pred_check
        %p732 = pneg %p731
      $region54: #{tpu_custom_call.1} parent=5 // pred_check_branch
        %734 = sbr.rel (%p732) target = $region56
      $region55: #{tpu_custom_call.1} parent=5 // pred_region
        %s735 = ssub.s32 %s26, 2
      $region56: #{tpu_custom_call.1} parent=5 // pred_fallthru
        _
    $region6: #{tpu_custom_call.1} parent=1 // loop_footer
      %s30 = sadd.s32 1, %s26
    $region7: #{tpu_custom_call.1} parent=1 // loop_footer_branch
      %25 = sbr.rel target = $region3
    $region8: #{tpu_custom_call.1} parent=1 // loop_exit
      _
    %736 = vsyncpa [#allocation6], 1
    %s737 = scalar_lea.sflag [#allocation6], 1
    %738 = vsyncpa %s737, 1
    %739 = vsyncpa [#allocation9], 1
    %s740 = scalar_lea.sflag [#allocation9], 1
    %741 = vsyncpa %s740, 1
    %742 = vsyncpa [#allocation7], 1
    %s743 = scalar_lea.sflag [#allocation7], 1
    %744 = vsyncpa %s743, 1

</llo_original>
